<compile_context>
chip_gen: v6e
topology: v6e:2x2x1
jax: 0.10.0
libtpu: 0.0.40
codegen_flags: <defaults>
</compile_context>

<pallas_src>
import jax
import jax.numpy as jnp
from jax.experimental import pallas as pl
from jax.experimental.pallas import tpu as pltpu

INPUT_SIZE = 32    # total number of elements in the gradient sequence
HIDDEN_SIZE = 32   # LSTM hidden size
NUM_LAYERS = 1     # module default; forward implemented for the 1-layer case
# TODO(synk): num_layers > 1 would require stacking additional zero-state LSTM steps.

# ----------------------------------------------------------------------------
# Packed parameter slab layout: (80, 128) float32, every section 8-row aligned.
#   rows [ 0, 32)  W_gates  (I, 4H)   gate order [i | g | o | f], i/o cols * 0.5
#   row   32       b_gates  (4H,)     b_ih + b_hh, same order / pre-scale
#   rows [40, 72)  W_fc     (H, I)    fc weight^T, zero-padded to 128 lanes
#   row   72       b_fc     (I,)      fc bias, zero-padded to 128 lanes
# ----------------------------------------------------------------------------
_LANES = 4 * HIDDEN_SIZE          # 128
_ROW_WG = 0
_ROW_BG = 32
_ROW_WFC = 40
_ROW_BFC = 72
_PARAM_ROWS = 80


def learner_kernel(x_ref, p_ref, o_ref):
    """One LSTM step (zero state) + Linear + Tanh for a tile of batch rows.

    x_ref: (TB, I) input rows      p_ref: (80, 128) packed weight slab
    o_ref: (TB, I) outputs
    """
    I, H = INPUT_SIZE, HIDDEN_SIZE
    x = x_ref[...]                                              # (TB, I)

    w_g = p_ref[_ROW_WG:_ROW_WG + I, :]                         # (I, 4H)
    b_g = p_ref[_ROW_BG:_ROW_BG + 1, :]                         # (1, 4H)
    w_fc = p_ref[_ROW_WFC:_ROW_WFC + H, :]                      # (H, 128) zero-padded
    b_fc = p_ref[_ROW_BFC:_ROW_BFC + 1, :]                      # (1, 128) zero-padded

    # One fused MXU call over the full 128-lane gate width.
    gates = jnp.dot(x, w_g, preferred_element_type=jnp.float32) + b_g   # (TB, 128)

    # Single EUP pass over all gates. i/o columns were pre-scaled by 0.5 in
    # pack_params, so sigmoid(z) == 0.5 * tanh(z_scaled) + 0.5 on those lanes;
    # g lanes are plain tanh; f lanes are dead (c0 == 0).
    t = jnp.tanh(gates)
    u = 0.5 * t + 0.5                                            # cheap VPU affine

    sig_i = u[:, 0 * H:1 * H]                                    # lanes [0, 32)
    tanh_g = t[:, 1 * H:2 * H]                                   # lanes [32, 64)
    sig_o = u[:, 2 * H:3 * H]                                    # lanes [64, 96)

    c = sig_i * tanh_g                                           # + f * c0 (== 0)
    h = sig_o * jnp.tanh(c)                                      # (TB, H)

    # fc + tanh (padded lanes are zero-weight/zero-bias -> tanh(0)=0, discarded)
    y = jnp.tanh(jnp.dot(h, w_fc, preferred_element_type=jnp.float32) + b_fc)
    o_ref[...] = y[:, :I]                                        # (TB, I)


def init_params(key, input_size=INPUT_SIZE, hidden_size=HIDDEN_SIZE):
    """Deterministic init mirroring PyTorch's U(-1/sqrt(H), 1/sqrt(H)) scheme."""
    ks = jax.random.split(key, 6)
    bound = 1.0 / jnp.sqrt(jnp.float32(hidden_size))

    def u(k, shape):
        return jax.random.uniform(k, shape, minval=-bound, maxval=bound,
                                  dtype=jnp.float32)

    return {
        # PyTorch LSTM param shapes (gate order: i, f, g, o)
        "w_ih": u(ks[0], (4 * hidden_size, input_size)),
        "w_hh": u(ks[1], (4 * hidden_size, hidden_size)),   # unused (h0 == 0)
        "b_ih": u(ks[2], (4 * hidden_size,)),
        "b_hh": u(ks[3], (4 * hidden_size,)),
        # nn.Linear(hidden_size, input_size)
        "w_fc": u(ks[4], (input_size, hidden_size)),
        "b_fc": u(ks[5], (input_size,)),
    }


def pack_params(params):
    """One-time layout work: pack all weights/biases into a single (80, 128) slab."""
    I, H = INPUT_SIZE, HIDDEN_SIZE
    # Kernel lane layout hard-codes a full 128-lane gate vector.
    assert 4 * H == _LANES, "kernel assumes 4 * HIDDEN_SIZE == 128 lanes"
    assert I <= _LANES and H + 8 <= _ROW_BFC - _ROW_WFC + 8, "sizes break slab layout"

    w_ih = jnp.asarray(params["w_ih"], jnp.float32)              # (4H, I)
    b = (jnp.asarray(params["b_ih"], jnp.float32)
         + jnp.asarray(params["b_hh"], jnp.float32))             # (4H,)
    w_i, w_f, w_g, w_o = (w_ih[k * H:(k + 1) * H] for k in range(4))
    b_i, b_f, b_g, b_o = (b[k * H:(k + 1) * H] for k in range(4))

    # Reorder gates to [i | g | o | f]; fold the 0.5 sigmoid pre-scale into i, o.
    w_gates = jnp.concatenate([0.5 * w_i, w_g, 0.5 * w_o, w_f], axis=0).T   # (I, 4H)
    b_gates = jnp.concatenate([0.5 * b_i, b_g, 0.5 * b_o, b_f], axis=0)     # (4H,)

    w_fc = jnp.asarray(params["w_fc"], jnp.float32).T            # (H, I)
    b_fc = jnp.asarray(params["b_fc"], jnp.float32)              # (I,)

    slab = jnp.zeros((_PARAM_ROWS, _LANES), jnp.float32)
    slab = slab.at[_ROW_WG:_ROW_WG + I, :].set(w_gates)
    slab = slab.at[_ROW_BG, :].set(b_gates)
    slab = slab.at[_ROW_WFC:_ROW_WFC + H, :I].set(w_fc)
    slab = slab.at[_ROW_BFC, :I].set(b_fc)
    return slab


def _pallas_forward(x, slab, tile_b):
    """x: (B, I) f32, slab: (80, 128) f32 packed params. Returns (B, I)."""
    B, I = x.shape
    n_tiles = B // tile_b
    flops = B * (2 * I * _LANES + 2 * HIDDEN_SIZE * _LANES)
    return pl.pallas_call(
        learner_kernel,
        out_shape=jax.ShapeDtypeStruct((B, I), jnp.float32),
        grid_spec=pltpu.PrefetchScalarGridSpec(
            num_scalar_prefetch=0,
            grid=(n_tiles,),
            in_specs=[
                pl.BlockSpec((tile_b, I), lambda i: (i, 0)),
                # Constant index_map: the weight slab is DMA'd into VMEM once
                # and stays resident across all batch tiles.
                pl.BlockSpec((_PARAM_ROWS, _LANES), lambda i: (0, 0)),
            ],
            out_specs=pl.BlockSpec((tile_b, I), lambda i: (i, 0)),
        ),
        compiler_params=pltpu.CompilerParams(
            # batch tiles are independent -> shard across v7x's 2 TensorCores
            dimension_semantics=("parallel",)),
        cost_estimate=pl.CostEstimate(
            flops=flops,
            transcendentals=B * (_LANES + 2 * HIDDEN_SIZE),
            bytes_accessed=2 * B * I * 4 + _PARAM_ROWS * _LANES * 4),
    )(x, slab)


@jax.jit
def learner_forward(gradient_sequence, packed_params):
    """Module-exact forward: one gradient sequence (any shape, I elements) -> (I,)."""
    x = gradient_sequence.reshape(1, -1).astype(jnp.float32)      # view(1, 1, -1)
    out = _pallas_forward(x, packed_params, tile_b=1)
    return out.reshape(-1)                                        # flatten()


@jax.jit
def learner_forward_batch(batch, packed_params):
    """Throughput path: B independent gradient sequences per pallas_call."""
    x = batch.reshape(batch.shape[0], -1).astype(jnp.float32)     # (B, I)
    B = x.shape[0]
    tile_b = 128 if B % 128 == 0 else (8 if B % 8 == 0 else B)
    return _pallas_forward(x, packed_params, tile_b=tile_b)


def reference_forward(gradient_sequence, params):
    """Pure-JAX reference matching torch.nn.LSTM (1 layer, 1 step, zero state)."""
    H = HIDDEN_SIZE
    x = gradient_sequence.reshape(1, -1).astype(jnp.float32)
    gates = x @ params["w_ih"].T + params["b_ih"] + params["b_hh"]
    i = jax.nn.sigmoid(gates[:, 0 * H:1 * H])
    f = jax.nn.sigmoid(gates[:, 1 * H:2 * H])
    g = jnp.tanh(gates[:, 2 * H:3 * H])
    o = jax.nn.sigmoid(gates[:, 3 * H:4 * H])
    c = f * 0.0 + i * g
    h = o * jnp.tanh(c)
    y = jnp.tanh(h @ params["w_fc"].T + params["b_fc"])
    return y.reshape(-1)


if __name__ == "__main__":
    key = jax.random.PRNGKey(0)
    k_param, k_data, k_batch = jax.random.split(key, 3)

    params = init_params(k_param)
    packed = pack_params(params)   # one-time layout work, outside the hot path

    # --- Single-sequence path (exact module semantics) ---
    gradient_sequence = jax.random.normal(k_data, (INPUT_SIZE,), dtype=jnp.float32)
    out = jax.block_until_ready(learner_forward(gradient_sequence, packed))
    ref = reference_forward(gradient_sequence, params)
    assert out.shape == (INPUT_SIZE,)
    assert jnp.allclose(out, ref, atol=1e-5, rtol=1e-5), (out, ref)

    # --- Batched path (16 independent gradient sequences in one call) ---
    batch = jax.random.normal(k_batch, (16, INPUT_SIZE), dtype=jnp.float32)
    out_b = jax.block_until_ready(learner_forward_batch(batch, packed))
    ref_b = jax.vmap(lambda r: reference_forward(r, params))(batch)
    assert out_b.shape == (16, INPUT_SIZE)
    assert jnp.allclose(out_b, ref_b, atol=1e-5, rtol=1e-5), (out_b, ref_b)

    print("KERNEL_OK")
</pallas_src>

<mosaic_0001>
module attributes {stable_mosaic.version = 11 : i64} {
  func.func @learner_kernel(%arg0: i32, %arg1: memref<1x32xf32, #tpu.memory_space<vmem>>, %arg2: memref<80x128xf32, #tpu.memory_space<vmem>>, %arg3: memref<1x32xf32, #tpu.memory_space<vmem>>) attributes {dimension_semantics = [#tpu.dimension_semantics<parallel>], iteration_bounds = array<i64: 1>, scalar_prefetch = 0 : i64, scratch_operands = 0 : i64, tpu.core_type = #tpu.core_type<tc>, window_params = [{transform_indices = @transform_0, window_bounds = array<i64: 1, 32>}, {pipeline_mode = #tpu.pipeline_mode<synchronous>, transform_indices = @transform_1, window_bounds = array<i64: 80, 128>}, {transform_indices = @transform_2, window_bounds = array<i64: 1, 32>}]} {
    %c0 = arith.constant 0 : index
    %c0_0 = arith.constant 0 : index
    %0 = vector.load %arg1[%c0, %c0_0] : memref<1x32xf32, #tpu.memory_space<vmem>>, vector<1x32xf32>
    %c0_1 = arith.constant 0 : index
    %c0_2 = arith.constant 0 : index
    %1 = vector.load %arg2[%c0_1, %c0_2] : memref<80x128xf32, #tpu.memory_space<vmem>>, vector<32x128xf32>
    %c32 = arith.constant 32 : index
    %c0_3 = arith.constant 0 : index
    %2 = vector.load %arg2[%c32, %c0_3] : memref<80x128xf32, #tpu.memory_space<vmem>>, vector<1x128xf32>
    %c40 = arith.constant 40 : index
    %c0_4 = arith.constant 0 : index
    %3 = vector.load %arg2[%c40, %c0_4] : memref<80x128xf32, #tpu.memory_space<vmem>>, vector<32x128xf32>
    %c72 = arith.constant 72 : index
    %c0_5 = arith.constant 0 : index
    %4 = vector.load %arg2[%c72, %c0_5] : memref<80x128xf32, #tpu.memory_space<vmem>>, vector<1x128xf32>
    %cst = arith.constant dense<0.000000e+00> : vector<1x128xf32>
    %5 = tpu.matmul %0, %1, %cst {dimension_numbers = #tpu.dot_dimension_numbers<[1], [0], [0], [1], [0, 0, 1, 1], [], []>} : vector<1x32xf32>, vector<32x128xf32>, vector<1x128xf32> -> vector<1x128xf32>
    %6 = arith.addf %5, %2 : vector<1x128xf32>
    %7 = math.tanh %6 : vector<1x128xf32>
    %cst_6 = arith.constant 5.000000e-01 : f32
    %8 = vector.broadcast %cst_6 : f32 to vector<1x128xf32>
    %9 = arith.mulf %8, %7 : vector<1x128xf32>
    %cst_7 = arith.constant 5.000000e-01 : f32
    %10 = vector.broadcast %cst_7 : f32 to vector<1x128xf32>
    %11 = arith.addf %9, %10 : vector<1x128xf32>
    %12 = vector.extract_strided_slice %11 {offsets = [0, 0], sizes = [1, 32], strides = [1, 1]} : vector<1x128xf32> to vector<1x32xf32>
    %13 = vector.extract_strided_slice %7 {offsets = [0, 32], sizes = [1, 32], strides = [1, 1]} : vector<1x128xf32> to vector<1x32xf32>
    %14 = vector.extract_strided_slice %11 {offsets = [0, 64], sizes = [1, 32], strides = [1, 1]} : vector<1x128xf32> to vector<1x32xf32>
    %15 = arith.mulf %12, %13 : vector<1x32xf32>
    %16 = math.tanh %15 : vector<1x32xf32>
    %17 = arith.mulf %14, %16 : vector<1x32xf32>
    %cst_8 = arith.constant dense<0.000000e+00> : vector<1x128xf32>
    %18 = tpu.matmul %17, %3, %cst_8 {dimension_numbers = #tpu.dot_dimension_numbers<[1], [0], [0], [1], [0, 0, 1, 1], [], []>} : vector<1x32xf32>, vector<32x128xf32>, vector<1x128xf32> -> vector<1x128xf32>
    %19 = arith.addf %18, %4 : vector<1x128xf32>
    %20 = math.tanh %19 : vector<1x128xf32>
    %21 = vector.extract_strided_slice %20 {offsets = [0, 0], sizes = [1, 32], strides = [1, 1]} : vector<1x128xf32> to vector<1x32xf32>
    %c0_9 = arith.constant 0 : index
    %c0_10 = arith.constant 0 : index
    %22 = vector.load %arg3[%c0_9, %c0_10] : memref<1x32xf32, #tpu.memory_space<vmem>>, vector<1x32xf32>
    tpu.vector_store %arg3[%c0_9, %c0_10], %21 {strides = array<i32>} : memref<1x32xf32, #tpu.memory_space<vmem>>, vector<1x32xf32>,
    return
  }
  func.func @transform_0(%arg0: i32) -> (i32, i32) {
    %c0_i32 = arith.constant 0 : i32
    %c0_i32_0 = arith.constant 0 : i32
    return %arg0, %c0_i32 : i32, i32
  }
  func.func @transform_1(%arg0: i32) -> (i32, i32) {
    %c0_i32 = arith.constant 0 : i32
    %c0_i32_0 = arith.constant 0 : i32
    %c0_i32_1 = arith.constant 0 : i32
    return %c0_i32, %c0_i32_0 : i32, i32
  }
  func.func @transform_2(%arg0: i32) -> (i32, i32) {
    %c0_i32 = arith.constant 0 : i32
    %c0_i32_0 = arith.constant 0 : i32
    return %arg0, %c0_i32 : i32, i32
  }
}

</mosaic_0001>

<llo_original>
// kernel: learner_forward.1
$region0: #{learner_forward.1}
  #allocation0 [shape = 'u32[]', space=smem, size = 0x4, offset = 0x4, fixed_abs, tag = 'smem constant byte address 0x4 - core index']
  #allocation1 [shape = 'u32[144,128]{1,0:T(1,128)}', space=vmem, size = 0x12000, scoped, tag = 'internal scratch']
  %s0 = inlined_call_operand.vmem [shape: f32[1,32], index: 0, kind: input, shape index: {}]
  %s1 = inlined_call_operand.hbm [shape: f32[80,128], index: 1, kind: input, shape index: {}]
  %s2 = inlined_call_operand.hbm [shape: f32[1,32], index: 2, kind: output, shape index: {}]
  %s3 = sld [smem:[#allocation0]]
  $region22: #{learner_forward.1} parent=0
    _
  %s5 = ssub.s32 1, %s3
  %s6 = scalar_select 0, %s5, %s3
  $region1: #{learner_forward.1} parent=0
    #allocation2 [shape = 'u8[40960]{0}', space=vmem, size = 0xa000, scoped, tag = 'input window, operand 1, single buffered']
    #allocation3 [shape = 's32[1]{0}', space=sflag, size = 0x4, scoped, tag = 'scoped memory for learner_forward.1']
    #allocation4 [shape = 's32[1]{0}', space=sflag, size = 0x4, scoped, tag = 'scoped memory for learner_forward.1']
    #allocation5 [shape = 'u8[512]{0}', space=vmem, size = 0x400, scoped, tag = 'output window, operand 0, single buffered']
    %7 = vsyncpa [#allocation3], 0
    %8 = vsyncpa [#allocation4], 0
    // Predicated region
    $region2: #{learner_forward.1} parent=1 // pred_check
      _
    $region3: #{learner_forward.1} parent=1 // pred_check_branch
      %10 = sbr.rel (0) target = $region5
    $region4: #{learner_forward.1} parent=1 // pred_region
      _
    $region5: #{learner_forward.1} parent=1 // pred_fallthru
      _
    // Predicated region
    $region6: #{learner_forward.1} parent=1 // pred_check
      _
    $region7: #{learner_forward.1} parent=1 // pred_check_branch
      %12 = sbr.rel (0) target = $region9
    $region8: #{learner_forward.1} parent=1 // pred_region
      %s14 = ssub.s32 1280, 1280
      %15 = vsyncadd [#allocation3], %s14
      %s16 = sshll.u32 [#allocation2], 4
      %s17 = int_to_ptr.vmem [resolvable:$true] %s16
      %22 = dma.hbm_to_vmem [thread:$0]  %s1, 1280, %s17, [#allocation3], 128, 128, 8
    $region9: #{learner_forward.1} parent=1 // pred_fallthru
      _
    // Predicated region
    $region10: #{learner_forward.1} parent=1 // pred_check
      _
    $region11: #{learner_forward.1} parent=1 // pred_check_branch
      %24 = sbr.rel (0) target = $region13
    $region12: #{learner_forward.1} parent=1 // pred_region
      %25 = dma.done [#allocation3], 1280
    $region13: #{learner_forward.1} parent=1 // pred_fallthru
      _
    %v26 = vld [vmem:[%s0] sm:$0x1]
    %v27 = vld [vmem:[#allocation2] sm:$0xff]
    %v28 = vld [vmem:[#allocation2 + $0x8] sm:$0xff]
    %v29 = vld [vmem:[#allocation2 + $0x10] sm:$0xff]
    %v30 = vld [vmem:[#allocation2 + $0x18] sm:$0xff]
    %v31 = vld [vmem:[#allocation2 + $0x20] sm:$0x1]
    %v32 = vld [vmem:[#allocation2 + $0x28] sm:$0xff]
    %v33 = vld [vmem:[#allocation2 + $0x30] sm:$0xff]
    %v34 = vld [vmem:[#allocation2 + $0x38] sm:$0xff]
    %v35 = vld [vmem:[#allocation2 + $0x40] sm:$0xff]
    %v36 = vld [vmem:[#allocation2 + $0x48] sm:$0x1]
    %vm37 = vcmask 261120
    %v39 = vsel %vm37, %v26, 0
    %41 = vmatprep.subr.mxu0 0.0
    %42 = vmatpush1.msra.mxu0 0.0
    %43 = vmatprep.subr.mxu0 0.0
    %44 = vmatpush1.msra.mxu0 0.0
    %45 = vmatprep.subr.mxu0 0.0
    %46 = vmatpush1.msra.mxu0 0.0
    %47 = vmatprep.subr.mxu0 0.0
    %48 = vmatpush1.msra.mxu0 0.0
    %49 = vmatprep.subr.mxu0 0.0
    %50 = vmatpush1.msra.mxu0 0.0
    %51 = vmatprep.subr.mxu0 0.0
    %52 = vmatpush1.msra.mxu0 0.0
    %53 = vmatprep.subr.mxu0 0.0
    %54 = vmatpush1.msra.mxu0 0.0
    %55 = vmatprep.subr.mxu0 0.0
    %56 = vmatpush1.msra.mxu0 0.0
    %57 = vmatprep.subr.mxu0 0.0
    %58 = vmatpush1.msra.mxu0 0.0
    %59 = vmatprep.subr.mxu0 0.0
    %60 = vmatpush1.msra.mxu0 0.0
    %61 = vmatprep.subr.mxu0 0.0
    %62 = vmatpush1.msra.mxu0 0.0
    %63 = vmatprep.subr.mxu0 0.0
    %64 = vmatpush1.msra.mxu0 0.0
    %65 = vmatprep.subr.mxu0 0.0
    %66 = vmatpush1.msra.mxu0 %v30
    %67 = vmatprep.subr.mxu0 0.0
    %68 = vmatpush1.msra.mxu0 %v29
    %69 = vmatprep.subr.mxu0 0.0
    %70 = vmatpush1.msra.mxu0 %v28
    %71 = vmatprep.subr.mxu0 0.0
    %72 = vmatpush1.msra.mxu0 %v27
    %73 = vmatprep.subr.mxu0 0.0
    %74 = vmatpush2.msra.mxu0 0.0
    %75 = vmatprep.subr.mxu0 0.0
    %76 = vmatpush2.msra.mxu0 0.0
    %77 = vmatprep.subr.mxu0 0.0
    %78 = vmatpush2.msra.mxu0 0.0
    %79 = vmatprep.subr.mxu0 0.0
    %80 = vmatpush2.msra.mxu0 0.0
    %81 = vmatprep.subr.mxu0 0.0
    %82 = vmatpush2.msra.mxu0 0.0
    %83 = vmatprep.subr.mxu0 0.0
    %84 = vmatpush2.msra.mxu0 0.0
    %85 = vmatprep.subr.mxu0 0.0
    %86 = vmatpush2.msra.mxu0 0.0
    %87 = vmatprep.subr.mxu0 0.0
    %88 = vmatpush2.msra.mxu0 0.0
    %89 = vmatprep.subr.mxu0 0.0
    %90 = vmatpush2.msra.mxu0 0.0
    %91 = vmatprep.subr.mxu0 0.0
    %92 = vmatpush2.msra.mxu0 0.0
    %93 = vmatprep.subr.mxu0 0.0
    %94 = vmatpush2.msra.mxu0 0.0
    %95 = vmatprep.subr.mxu0 0.0
    %96 = vmatpush2.msra.mxu0 0.0
    %97 = vmatprep.subr.mxu0 0.0
    %98 = vmatpush2.msra.mxu0 0.0
    %99 = vmatprep.subr.mxu0 0.0
    %100 = vmatpush2.msra.mxu0 0.0
    %101 = vmatprep.subr.mxu0 0.0
    %102 = vmatpush2.msra.mxu0 0.0
    %103 = vmatprep.subr.mxu0 0.0
    %104 = vmatpush2.msra.mxu0 0.0
    %105 = vmatprep.mubr.f32.mxu0 0.0
    %106 = vmatmul.mubr.f32.gmra.mxu0 %v39
    %v107 = vpop.f32.mrf.mxu0
    %v108 = vadd.f32 %v31, %v107
    %v109 = vpop.f32.mrf.mxu0
    %110 = vdwg.mxu0
    %v111 = vtanh.pop %v108
    %v112 = vmul.f32 %v111, 0.5
    %v113 = vadd.f32 %v112, 0.5
    %115 = vrot.lane.b32.xlu0 %v111, 96
    %v116 = vpop.permute.xlu0 %115
    %v118 = vmul.f32 %v113, %v116
    %v119 = vtanh.pop %v118
    %121 = vrot.lane.b32.xlu0 %v119, 64
    %v122 = vpop.permute.xlu0 %121
    %v124 = vmul.f32 %v113, %v122
    %126 = vrot.lane.b32.xlu0 %v124, 64
    %v127 = vpop.permute.xlu0 %126
    %v128 = vsel %vm37, %v127, 0
    %130 = vmatprep.subr.mxu0 0.0
    %131 = vmatpush1.msra.mxu0 0.0
    %132 = vmatprep.subr.mxu0 0.0
    %133 = vmatpush1.msra.mxu0 0.0
    %134 = vmatprep.subr.mxu0 0.0
    %135 = vmatpush1.msra.mxu0 0.0
    %136 = vmatprep.subr.mxu0 0.0
    %137 = vmatpush1.msra.mxu0 0.0
    %138 = vmatprep.subr.mxu0 0.0
    %139 = vmatpush1.msra.mxu0 0.0
    %140 = vmatprep.subr.mxu0 0.0
    %141 = vmatpush1.msra.mxu0 0.0
    %142 = vmatprep.subr.mxu0 0.0
    %143 = vmatpush1.msra.mxu0 0.0
    %144 = vmatprep.subr.mxu0 0.0
    %145 = vmatpush1.msra.mxu0 0.0
    %146 = vmatprep.subr.mxu0 0.0
    %147 = vmatpush1.msra.mxu0 0.0
    %148 = vmatprep.subr.mxu0 0.0
    %149 = vmatpush1.msra.mxu0 0.0
    %150 = vmatprep.subr.mxu0 0.0
    %151 = vmatpush1.msra.mxu0 0.0
    %152 = vmatprep.subr.mxu0 0.0
    %153 = vmatpush1.msra.mxu0 0.0
    %154 = vmatprep.subr.mxu0 0.0
    %155 = vmatpush1.msra.mxu0 %v35
    %156 = vmatprep.subr.mxu0 0.0
    %157 = vmatpush1.msra.mxu0 %v34
    %158 = vmatprep.subr.mxu0 0.0
    %159 = vmatpush1.msra.mxu0 %v33
    %160 = vmatprep.subr.mxu0 0.0
    %161 = vmatpush1.msra.mxu0 %v32
    %162 = vmatprep.subr.mxu0 0.0
    %163 = vmatpush2.msra.mxu0 0.0
    %164 = vmatprep.subr.mxu0 0.0
    %165 = vmatpush2.msra.mxu0 0.0
    %166 = vmatprep.subr.mxu0 0.0
    %167 = vmatpush2.msra.mxu0 0.0
    %168 = vmatprep.subr.mxu0 0.0
    %169 = vmatpush2.msra.mxu0 0.0
    %170 = vmatprep.subr.mxu0 0.0
    %171 = vmatpush2.msra.mxu0 0.0
    %172 = vmatprep.subr.mxu0 0.0
    %173 = vmatpush2.msra.mxu0 0.0
    %174 = vmatprep.subr.mxu0 0.0
    %175 = vmatpush2.msra.mxu0 0.0
    %176 = vmatprep.subr.mxu0 0.0
    %177 = vmatpush2.msra.mxu0 0.0
    %178 = vmatprep.subr.mxu0 0.0
    %179 = vmatpush2.msra.mxu0 0.0
    %180 = vmatprep.subr.mxu0 0.0
    %181 = vmatpush2.msra.mxu0 0.0
    %182 = vmatprep.subr.mxu0 0.0
    %183 = vmatpush2.msra.mxu0 0.0
    %184 = vmatprep.subr.mxu0 0.0
    %185 = vmatpush2.msra.mxu0 0.0
    %186 = vmatprep.subr.mxu0 0.0
    %187 = vmatpush2.msra.mxu0 0.0
    %188 = vmatprep.subr.mxu0 0.0
    %189 = vmatpush2.msra.mxu0 0.0
    %190 = vmatprep.subr.mxu0 0.0
    %191 = vmatpush2.msra.mxu0 0.0
    %192 = vmatprep.subr.mxu0 0.0
    %193 = vmatpush2.msra.mxu0 0.0
    %194 = vmatprep.mubr.f32.mxu0 0.0
    %195 = vmatmul.mubr.f32.gmra.mxu0 %v128
    %v196 = vpop.f32.mrf.mxu0
    %v197 = vadd.f32 %v36, %v196
    %v198 = vpop.f32.mrf.mxu0
    %199 = vdwg.mxu0
    %v200 = vtanh.pop %v197
    %vm201 = vcmask 253952
    %202 = vst.msk [vmem:[#allocation5] sm:$0x1] %vm201, %v200
    // Predicated region
    $region14: #{learner_forward.1} parent=1 // pred_check
      _
    $region15: #{learner_forward.1} parent=1 // pred_check_branch
      %204 = sbr.rel (0) target = $region17
    $region16: #{learner_forward.1} parent=1 // pred_region
      %s206 = ssub.s32 16, 16
      %207 = vsyncadd [#allocation4], %s206
      %s209 = sshll.u32 [#allocation5], 4
      %s210 = int_to_ptr.vmem [resolvable:$true] %s209
      %212 = dma.vmem_to_hbm [thread:$0]  %s210, 16, %s2, [#allocation4]
    $region17: #{learner_forward.1} parent=1 // pred_fallthru
      _
    // Predicated region
    $region18: #{learner_forward.1} parent=1 // pred_check
      _
    $region19: #{learner_forward.1} parent=1 // pred_check_branch
      %214 = sbr.rel (0) target = $region21
    $region20: #{learner_forward.1} parent=1 // pred_region
      %215 = dma.done [#allocation4], 16
    $region21: #{learner_forward.1} parent=1 // pred_fallthru
      _
    %216 = vsyncpa [#allocation3], 1
    %217 = vsyncpa [#allocation4], 1

</llo_original>
